<compile_context>
chip_gen: v6e
topology: v6e:2x2x1
jax: 0.10.0
libtpu: 0.0.40
codegen_flags: <defaults>
</compile_context>

<pallas_src>
import jax
import jax.numpy as jnp
from jax import lax
from jax.experimental import pallas as pl
from jax.experimental.pallas import tpu as pltpu


_SMALL_PROBLEM_BYTES = 256 * 1024       # below this, plain XLA wins (launch overhead)
_TARGET_BLOCK_BYTES = 2 * 1024 * 1024   # ~2 MiB of x per block (good for v5e/v6e/v7x)
_MAX_BLOCK_COLS = 8192                  # L-tile width when L itself must be tiled (mult of 128)


def _round_down8(n):
    return max(8, (n // 8) * 8)


def _round_up8(n):
    return ((n + 7) // 8) * 8


def _pick_blocks(B, L):
    """Pick (block_rows, block_cols) targeting ~2 MiB x-blocks."""
    # Column (L) tile: keep the whole L if even an 8-row slab fits the target,
    # otherwise chunk L in 128-aligned pieces (reduction-axis tiling).
    if 8 * L * 4 <= _TARGET_BLOCK_BYTES:
        tl = L
    else:
        tl = _MAX_BLOCK_COLS
    # Row (batch) tile: ~TARGET bytes of x per block, multiple of 8.
    tm = _round_down8(_TARGET_BLOCK_BYTES // (4 * tl))
    if tm >= B:
        if B >= 64:
            # Split into >=2 blocks so v7x's two TensorCores both get work.
            tm = _round_up8((B + 1) // 2)
            if tm >= B:
                tm = B
        else:
            tm = B          # single full-extent block (no (8,128) constraint then)
    return tm, tl


def _make_kernel(L, block_cols, mask_cols):
    def kernel(x_ref, w_ref, b_ref, o_ref, acc_ref):
        # x_ref: (TM, TL) VMEM; w_ref: (1, TL) VMEM; b_ref: (1, 1) SMEM;
        # o_ref: (TM, 1) VMEM; acc_ref: (TM, 1) f32 VMEM scratch.
        k = pl.program_id(1)

        @pl.when(k == 0)
        def _():
            acc_ref[...] = jnp.zeros_like(acc_ref)

        prod = x_ref[...] * w_ref[...]            # VPU: (1, TL) row broadcast over TM rows
        if mask_cols:
            # Last L-block overhangs the array: zero out-of-bounds columns so garbage
            # reads cannot contaminate the reduction (jnp.where kills NaNs too).
            col = k * block_cols + lax.broadcasted_iota(jnp.int32, prod.shape, 1)
            prod = jnp.where(col < L, prod, 0.0)
        acc_ref[...] += jnp.sum(prod, axis=-1, keepdims=True)   # XLU lane reduce -> (TM, 1)

        @pl.when(k == pl.num_programs(1) - 1)
        def _():
            z = acc_ref[...] + b_ref[0, 0]        # scalar bias from SMEM
            o_ref[...] = (1.0 / (1.0 + jnp.exp(-z))).astype(o_ref.dtype)  # exact sigmoid

    return kernel


def even_discriminator(x, weight, bias, *, block_rows=None, block_cols=None,
                       force_pallas=False):
    """x: (B, L); weight: (1, L) (PyTorch nn.Linear layout); bias: (1,)."""
    B, L = x.shape
    w = weight.astype(x.dtype)
    b = bias.astype(x.dtype)

    # Small-problem fallback: at tiny sizes XLA's fused elementwise path is strictly
    # faster than the pipeline prologue + kernel launch.
    if not force_pallas and B * L * x.dtype.itemsize < _SMALL_PROBLEM_BYTES:
        return jax.nn.sigmoid(x @ w.T + b)

    tm, tl = _pick_blocks(B, L)
    if block_rows is not None:
        tm = block_rows
    if block_cols is not None:
        tl = block_cols
    grid = (pl.cdiv(B, tm), pl.cdiv(L, tl))       # no padding: overhang blocks are clamped
    mask_cols = (L % tl) != 0

    kernel = _make_kernel(L, tl, mask_cols)
    b2 = b.reshape(1, 1)

    out = pl.pallas_call(
        kernel,
        out_shape=jax.ShapeDtypeStruct((B, 1), x.dtype),
        grid_spec=pltpu.PrefetchScalarGridSpec(
            num_scalar_prefetch=0,
            grid=grid,
            in_specs=[
                pl.BlockSpec((tm, tl), lambda i, k: (i, k)),        # x tile
                pl.BlockSpec((1, tl), lambda i, k: (0, k)),         # weight row chunk
                pl.BlockSpec(memory_space=pltpu.MemorySpace.SMEM),  # bias scalar
            ],
            out_specs=pl.BlockSpec((tm, 1), lambda i, k: (i, 0)),
            scratch_shapes=[pltpu.VMEM((tm, 1), jnp.float32)],
        ),
        compiler_params=pltpu.CompilerParams(
            dimension_semantics=("parallel", "arbitrary")),
    )(x, w, b2)
    return out


def reference(x, weight, bias):
    return jax.nn.sigmoid(x @ weight.T + bias)


if __name__ == "__main__":
    key = jax.random.PRNGKey(0)
    keys = jax.random.split(key, 6)

    # Case 1: the module's natural size (B=8, L=16) — tiny, uses the XLA fallback path.
    B1, L1 = 8, 16
    bound1 = 1.0 / (L1 ** 0.5)
    w1 = jax.random.uniform(keys[0], (1, L1), jnp.float32, -bound1, bound1)
    b1 = jax.random.uniform(keys[1], (1,), jnp.float32, -bound1, bound1)
    x1 = jax.random.normal(keys[2], (B1, L1), jnp.float32)

    out1 = jax.block_until_ready(even_discriminator(x1, w1, b1))
    ref1 = reference(x1, w1, b1)
    assert out1.shape == (B1, 1)
    assert jnp.allclose(out1, ref1, atol=1e-6, rtol=1e-6)

    # Case 1b: same shape forced through the Pallas kernel (single full-array block).
    out1b = jax.block_until_ready(even_discriminator(x1, w1, b1, force_pallas=True))
    assert jnp.allclose(out1b, ref1, atol=1e-5, rtol=1e-5)

    # Case 2: multi-tile grid — B not a multiple of the block (overhanging batch block,
    # masked writeback) and L tiled with an overhanging last reduction block (in-kernel
    # column mask + accumulator across the "arbitrary" axis).
    B2, L2 = 300, 192
    bound2 = 1.0 / (L2 ** 0.5)
    w2 = jax.random.uniform(keys[3], (1, L2), jnp.float32, -bound2, bound2)
    b2 = jax.random.uniform(keys[4], (1,), jnp.float32, -bound2, bound2)
    x2 = jax.random.normal(keys[5], (B2, L2), jnp.float32)

    out2 = jax.block_until_ready(
        even_discriminator(x2, w2, b2, force_pallas=True,
                           block_rows=128, block_cols=128))
    ref2 = reference(x2, w2, b2)
    assert out2.shape == (B2, 1)
    assert jnp.allclose(out2, ref2, atol=1e-5, rtol=1e-5)
    # Explicitly verify the last row of the overhanging batch block (no stale-row leakage).
    assert jnp.allclose(out2[-1], ref2[-1], atol=1e-5, rtol=1e-5)

    print("KERNEL_OK")
</pallas_src>

<mosaic_0001>
module attributes {stable_mosaic.version = 11 : i64} {
  func.func @kernel(%arg0: i32, %arg1: i32, %arg2: memref<8x16xf32, #tpu.memory_space<vmem>>, %arg3: memref<1x16xf32, #tpu.memory_space<vmem>>, %arg4: memref<1x1xf32, #tpu.memory_space<smem>>, %arg5: memref<8x1xf32, #tpu.memory_space<vmem>>, %arg6: memref<8x1xf32, #tpu.memory_space<vmem>>) attributes {dimension_semantics = [#tpu.dimension_semantics<parallel>, #tpu.dimension_semantics<arbitrary>], iteration_bounds = array<i64: 1, 1>, scalar_prefetch = 0 : i64, scratch_operands = 1 : i64, tpu.core_type = #tpu.core_type<tc>, window_params = [{transform_indices = @transform_0, window_bounds = array<i64: 8, 16>}, {transform_indices = @transform_1, window_bounds = array<i64: 1, 16>}, {transform_indices = @transform_2, window_bounds = array<i64: 1, 1>}, {transform_indices = @transform_3, window_bounds = array<i64: 8, 1>}]} {
    %c0_i32 = arith.constant 0 : i32
    %0 = arith.cmpi eq, %arg1, %c0_i32 : i32
    %1 = arith.extui %0 : i1 to i32
    %c0_i32_0 = arith.constant 0 : i32
    %2 = arith.cmpi ne, %1, %c0_i32_0 : i32
    scf.if %2 {
      %cst_10 = arith.constant 0.000000e+00 : f32
      %15 = vector.broadcast %cst_10 : f32 to vector<8x1xf32>
      %c0_11 = arith.constant 0 : index
      %c0_12 = arith.constant 0 : index
      %16 = vector.load %arg6[%c0_11, %c0_12] : memref<8x1xf32, #tpu.memory_space<vmem>>, vector<8x1xf32>
      tpu.vector_store %arg6[%c0_11, %c0_12], %15 {strides = array<i32>} : memref<8x1xf32, #tpu.memory_space<vmem>>, vector<8x1xf32>,
    } else {
    }
    %c0 = arith.constant 0 : index
    %c0_1 = arith.constant 0 : index
    %3 = vector.load %arg2[%c0, %c0_1] : memref<8x16xf32, #tpu.memory_space<vmem>>, vector<8x16xf32>
    %c0_2 = arith.constant 0 : index
    %c0_3 = arith.constant 0 : index
    %4 = vector.load %arg3[%c0_2, %c0_3] : memref<1x16xf32, #tpu.memory_space<vmem>>, vector<1x16xf32>
    %5 = vector.broadcast %4 : vector<1x16xf32> to vector<8x16xf32>
    %6 = arith.mulf %3, %5 : vector<8x16xf32>
    %c0_4 = arith.constant 0 : index
    %c0_5 = arith.constant 0 : index
    %7 = vector.load %arg6[%c0_4, %c0_5] : memref<8x1xf32, #tpu.memory_space<vmem>>, vector<8x1xf32>
    %cst = arith.constant dense<0.000000e+00> : vector<8xf32>
    %8 = vector.multi_reduction <add>, %6, %cst [1] : vector<8x16xf32> to vector<8xf32>
    %9 = vector.shape_cast %8 : vector<8xf32> to vector<8x1xf32>
    %10 = arith.addf %7, %9 : vector<8x1xf32>
    %c0_6 = arith.constant 0 : index
    %c0_7 = arith.constant 0 : index
    %11 = vector.load %arg6[%c0_6, %c0_7] : memref<8x1xf32, #tpu.memory_space<vmem>>, vector<8x1xf32>
    tpu.vector_store %arg6[%c0_6, %c0_7], %10 {strides = array<i32>} : memref<8x1xf32, #tpu.memory_space<vmem>>, vector<8x1xf32>,
    %c0_i32_8 = arith.constant 0 : i32
    %12 = arith.cmpi eq, %arg1, %c0_i32_8 : i32
    %13 = arith.extui %12 : i1 to i32
    %c0_i32_9 = arith.constant 0 : i32
    %14 = arith.cmpi ne, %13, %c0_i32_9 : i32
    scf.if %14 {
      %c0_10 = arith.constant 0 : index
      %c0_11 = arith.constant 0 : index
      %15 = vector.load %arg6[%c0_10, %c0_11] : memref<8x1xf32, #tpu.memory_space<vmem>>, vector<8x1xf32>
      %c0_12 = arith.constant 0 : index
      %c0_13 = arith.constant 0 : index
      %16 = memref.load %arg4[%c0_12, %c0_13] : memref<1x1xf32, #tpu.memory_space<smem>>
      %17 = vector.broadcast %16 : f32 to vector<8x1xf32>
      %18 = arith.addf %15, %17 : vector<8x1xf32>
      %cst_14 = arith.constant 0.000000e+00 : f32
      %19 = vector.broadcast %cst_14 : f32 to vector<8x1xf32>
      %20 = arith.subf %19, %18 : vector<8x1xf32>
      %21 = math.exp %20 : vector<8x1xf32>
      %cst_15 = arith.constant 1.000000e+00 : f32
      %22 = vector.broadcast %cst_15 : f32 to vector<8x1xf32>
      %23 = arith.addf %22, %21 : vector<8x1xf32>
      %cst_16 = arith.constant 1.000000e+00 : f32
      %24 = vector.broadcast %cst_16 : f32 to vector<8x1xf32>
      %25 = arith.divf %24, %23 : vector<8x1xf32>
      %c0_17 = arith.constant 0 : index
      %c0_18 = arith.constant 0 : index
      %26 = vector.load %arg5[%c0_17, %c0_18] : memref<8x1xf32, #tpu.memory_space<vmem>>, vector<8x1xf32>
      tpu.vector_store %arg5[%c0_17, %c0_18], %25 {strides = array<i32>} : memref<8x1xf32, #tpu.memory_space<vmem>>, vector<8x1xf32>,
    } else {
    }
    return
  }
  func.func @transform_0(%arg0: i32, %arg1: i32) -> (i32, i32) {
    %c0_i32 = arith.constant 0 : i32
    return %arg0, %arg1 : i32, i32
  }
  func.func @transform_1(%arg0: i32, %arg1: i32) -> (i32, i32) {
    %c0_i32 = arith.constant 0 : i32
    %c0_i32_0 = arith.constant 0 : i32
    return %c0_i32, %arg1 : i32, i32
  }
  func.func @transform_2(%arg0: i32, %arg1: i32) -> (i32, i32) {
    %c0_i32 = arith.constant 0 : i32
    %c0_i32_0 = arith.constant 0 : i32
    %c0_i32_1 = arith.constant 0 : i32
    return %c0_i32, %c0_i32_0 : i32, i32
  }
  func.func @transform_3(%arg0: i32, %arg1: i32) -> (i32, i32) {
    %c0_i32 = arith.constant 0 : i32
    %c0_i32_0 = arith.constant 0 : i32
    return %arg0, %c0_i32 : i32, i32
  }
}

</mosaic_0001>

<llo_original>
// kernel: tpu_custom_call.1
$region0: #{tpu_custom_call.1}
  #allocation0 [shape = 'u32[]', space=smem, size = 0x4, offset = 0x4, fixed_abs, tag = 'smem constant byte address 0x4 - core index']
  #allocation1 [shape = 'u32[144,128]{1,0:T(1,128)}', space=vmem, size = 0x12000, scoped, tag = 'internal scratch']
  #allocation2 [shape = 'f32[8,1]{1,0:T(8,128)}', space=vmem, size = 0x1000, scoped, tag = 'scratch operand']
  #allocation3 [shape = 'f32[1,1]{1,0:T(1,128)S(6)}', space=smem, size = 0x200, scoped, tag = 'scoped memory for tpu_custom_call.1']
  %s0 = inlined_call_operand.hbm [shape: f32[8,16], index: 0, kind: input, shape index: {}]
  %s1 = inlined_call_operand.vmem [shape: f32[1,16], index: 1, kind: input, shape index: {}]
  %s2 = inlined_call_operand.<no memory space> [shape: f32[1,1], index: 2, kind: input, shape index: {}]
  %s3 = inlined_call_operand.vmem [shape: f32[8,1], index: 3, kind: output, shape index: {}]
  %s4 = sld [smem:[#allocation0]]
  $region34: #{tpu_custom_call.1} parent=0
    _
  %s6 = ssub.s32 1, %s4
  %s7 = scalar_select 0, %s6, %s4
  %8 = sst [smem:[#allocation3]] %s2
  $region1: #{tpu_custom_call.1} parent=0
    #allocation4 [shape = 'u8[4096]{0}', space=vmem, size = 0x1000, scoped, tag = 'input window, operand 0, single buffered']
    #allocation5 [shape = 's32[1]{0}', space=sflag, size = 0x4, scoped, tag = 'scoped memory for tpu_custom_call.1']
    %9 = vsyncpa [#allocation5], 0
    // Predicated region
    $region2: #{tpu_custom_call.1} parent=1 // pred_check
      _
    $region3: #{tpu_custom_call.1} parent=1 // pred_check_branch
      %11 = sbr.rel (0) target = $region5
    $region4: #{tpu_custom_call.1} parent=1 // pred_region
      %s13 = ssub.s32 128, 128
      %14 = vsyncadd [#allocation5], %s13
      %s16 = sshll.u32 [#allocation4], 4
      %s17 = int_to_ptr.vmem [resolvable:$true] %s16
      %19 = dma.hbm_to_vmem [thread:$0]  %s0, 128, %s17, [#allocation5]
    $region5: #{tpu_custom_call.1} parent=1 // pred_fallthru
      _
    // Predicated region
    $region6: #{tpu_custom_call.1} parent=1 // pred_check
      _
    $region7: #{tpu_custom_call.1} parent=1 // pred_check_branch
      %21 = sbr.rel (0) target = $region9
    $region8: #{tpu_custom_call.1} parent=1 // pred_region
      _
    $region9: #{tpu_custom_call.1} parent=1 // pred_fallthru
      _
    // Predicated region
    $region10: #{tpu_custom_call.1} parent=1 // pred_check
      _
    $region11: #{tpu_custom_call.1} parent=1 // pred_check_branch
      %23 = sbr.rel (0) target = $region13
    $region12: #{tpu_custom_call.1} parent=1 // pred_region
      _
    $region13: #{tpu_custom_call.1} parent=1 // pred_fallthru
      _
    // Predicated region
    $region14: #{tpu_custom_call.1} parent=1 // pred_check
      _
    $region15: #{tpu_custom_call.1} parent=1 // pred_check_branch
      %25 = sbr.rel (0) target = $region17
    $region16: #{tpu_custom_call.1} parent=1 // pred_region
      %26 = dma.done [#allocation5], 128
    $region17: #{tpu_custom_call.1} parent=1 // pred_fallthru
      _
    %p27 = scmp.eq.s32.totalorder 0, 0
    // Predicated region
    $region18: #{tpu_custom_call.1} parent=1 // pred_check
      %p28 = pneg %p27
    $region19: #{tpu_custom_call.1} parent=1 // pred_check_branch
      %30 = sbr.rel (%p28) target = $region21
    $region20: #{tpu_custom_call.1} parent=1 // pred_region
      %vm31 = vcmask 7168
      %32 = vst.msk [vmem:[#allocation2] sm:$0xff] %vm31, 0.0
    $region21: #{tpu_custom_call.1} parent=1 // pred_fallthru
      _
    %v33 = vld [vmem:[#allocation4] sm:$0xff]
    %v34 = vld [vmem:[%s1] sm:$0x1]
    %v36 = vlaneseq
    %v37 = vshrl.u32 %v36, 7
    %v38 = vsub.s32 0, %v37
    %v39 = vrot.slane %v34, %v38
    %v41 = vmul.f32 %v33, %v39
    %v42 = vld [vmem:[#allocation2] sm:$0xff]
    %vm43 = vcmask 130048
    %v44 = vsel %vm43, %v41, 0.0
    %45 = vadd.xlane.f32.xlu0 %v44
    %v46 = vpop.xlane.xlu0 %45
    %v47 = vadd.f32 %v42, %v46
    %vm48 = vcmask 7168
    %49 = vst.msk [vmem:[#allocation2] sm:$0xff] %vm48, %v47
    // Predicated region
    $region22: #{tpu_custom_call.1} parent=1 // pred_check
      %p50 = pneg %p27
    $region23: #{tpu_custom_call.1} parent=1 // pred_check_branch
      %52 = sbr.rel (%p50) target = $region25
    $region24: #{tpu_custom_call.1} parent=1 // pred_region
      %v53 = vld [vmem:[#allocation2] sm:$0xff]
      %s54 = sld [smem:[#allocation3]]
      %v55 = vstv %s54
      %v56 = vadd.f32 %v53, %v55
      %v57 = vsub.f32 0.0, %v56
      %v58 = vmul.f32 %v57, 1.442695
      %v59 = vpow.pop %v58
      %v60 = vadd.f32 %v59, 1.0
      %v61 = vrcp.pop %v60
      %v62 = vmul.f32 1.0, %v61
      %63 = vst.msk [vmem:[%s3] sm:$0xff] %vm48, %v62
    $region25: #{tpu_custom_call.1} parent=1 // pred_fallthru
      _
    // Predicated region
    $region26: #{tpu_custom_call.1} parent=1 // pred_check
      _
    $region27: #{tpu_custom_call.1} parent=1 // pred_check_branch
      %65 = sbr.rel (0) target = $region29
    $region28: #{tpu_custom_call.1} parent=1 // pred_region
      _
    $region29: #{tpu_custom_call.1} parent=1 // pred_fallthru
      _
    // Predicated region
    $region30: #{tpu_custom_call.1} parent=1 // pred_check
      _
    $region31: #{tpu_custom_call.1} parent=1 // pred_check_branch
      %67 = sbr.rel (0) target = $region33
    $region32: #{tpu_custom_call.1} parent=1 // pred_region
      _
    $region33: #{tpu_custom_call.1} parent=1 // pred_fallthru
      _
    %68 = vsyncpa [#allocation5], 1

</llo_original>
